<compile_context>
chip_gen: v7x
topology: tpu7x:2x2x1
jax: 0.10.0
libtpu: 0.0.40
codegen_flags: <defaults>
</compile_context>

<pallas_src>
import functools

import jax
import jax.numpy as jnp
from jax import lax
from jax.experimental import pallas as pl
from jax.experimental.pallas import tpu as pltpu


def _vq_kernel(x_ref, neg2_embt_ref, embt_ref, e2_ref, q_ref, stats_ref, *,
               hw_valid, tile_hw, k):
    """One (batch, HW-tile) step of the VQ forward.

    x_ref         : (C, TILE_HW) f32  encoder outputs (columns = spatial locations)
    neg2_embt_ref : (C, K)       f32  codebook^T pre-scaled by -2 (resident)
    embt_ref      : (C, K)       f32  codebook^T (resident)
    e2_ref        : (K, 1)       f32  per-code squared norms (resident)
    q_ref         : (C, TILE_HW) f32  quantized output columns (lane-dense)
    stats_ref     : (K+1, 1)     f32  rows 0..K-1 = per-code counts, row K = SSE
    """
    x = x_ref[...]                                                  # (C, T)

    # distance up to an argmin-invariant per-column constant:
    #   dist_k = ||e_k||^2 - 2 <e_k, x>   (||x||^2 dropped)
    xe = lax.dot_general(neg2_embt_ref[...], x, (((0,), (0,)), ((), ())),
                         preferred_element_type=jnp.float32)        # (K, T)
    dist = xe + e2_ref[...]                                         # (K, T)

    # argmin over codes (first occurrence on ties)
    iota_k = lax.broadcasted_iota(jnp.int32, (k, 1), 0)             # (K, 1)
    min_d = jnp.min(dist, axis=0, keepdims=True)                    # (1, T)
    idx = jnp.min(jnp.where(dist <= min_d, iota_k, k), axis=0,
                  keepdims=True)                                    # (1, T)
    enc = (iota_k == idx).astype(jnp.float32)                       # (K, T)

    # quantized columns = codebook^T @ one_hot   (MXU)
    quant = jnp.dot(embt_ref[...], enc,
                    preferred_element_type=jnp.float32)             # (C, T)
    q_ref[...] = quant.astype(q_ref.dtype)

    diff = quant - x

    # fast (unmasked) path — runs on every tile
    stats_ref[pl.ds(0, k), :] = jnp.sum(enc, axis=1, keepdims=True)     # counts
    stats_ref[pl.ds(k, 1), :] = jnp.sum(diff * diff).reshape(1, 1)      # SSE

    # only the last HW tile can contain padded columns; mask it there only
    if (hw_valid % tile_hw) != 0:
        @pl.when(pl.program_id(1) == pl.num_programs(1) - 1)
        def _():
            col = (pl.program_id(1) * tile_hw
                   + lax.broadcasted_iota(jnp.int32, (1, tile_hw), 1))
            valid = (col < hw_valid).astype(jnp.float32)            # (1, T)
            stats_ref[pl.ds(0, k), :] = jnp.sum(enc * valid, axis=1,
                                                keepdims=True)
            stats_ref[pl.ds(k, 1), :] = jnp.sum(diff * diff * valid).reshape(1, 1)


def _choose_tile_hw(hw, batch, target):
    """Pick a lane-dense tile width, preferring one that divides HW exactly."""
    target = max(128, (int(target) // 128) * 128)
    if hw % 128 == 0:
        divs = [d for d in range(128, hw + 1, 128) if hw % d == 0]
        fits = [d for d in divs if d <= target]
        tile = max(fits) if fits else min(divs)
        # keep >= 2 total programs when possible so both v7x TCs get work
        if batch * (hw // tile) < 2:
            smaller = [d for d in divs if d < tile]
            if smaller:
                tile = max(smaller)
        return tile, hw                     # no padding, no masking needed
    # HW not 128-aligned (rare): pad the spatial axis and mask the last tile.
    tile = min(target, ((hw + 127) // 128) * 128)
    grid_hw = -(-hw // tile)
    return tile, grid_hw * tile


def vector_quantizer_forward(z_e, embedding_weight, commitment_cost, *,
                             tile_hw=4096):
    """z_e: (B, C, H, W) float32, embedding_weight: (K, C) float32."""
    B, C, H, W = z_e.shape
    K, C_emb = embedding_weight.shape
    assert C_emb == C
    hw = H * W
    N = B * hw

    # Free view: NCHW -> (B, C, HW). No transposes, no extra HBM round trips.
    x = z_e.reshape(B, C, hw).astype(jnp.float32)

    emb = embedding_weight.astype(jnp.float32)           # (K, C)
    embt = emb.T                                         # (C, K) resident codebook
    neg2_embt = -2.0 * embt                              # (C, K) pre-scaled (tiny)
    e2 = jnp.sum(emb * emb, axis=1, keepdims=True)       # (K, 1)

    tile_hw, hw_pad = _choose_tile_hw(hw, B, tile_hw)
    grid_hw = hw_pad // tile_hw
    if hw_pad != hw:                                     # rare ragged-HW fallback
        x = jnp.pad(x, ((0, 0), (0, 0), (0, hw_pad - hw)))

    kernel = functools.partial(_vq_kernel, hw_valid=hw, tile_hw=tile_hw, k=K)

    # Tight VMEM budget from the actual footprint (double-buffered x/q tiles,
    # (K, TILE) intermediates, resident codebooks, per-tile stats).
    per_step_elems = (2 * 2 * C * tile_hw
                      + 6 * K * tile_hw
                      + 4 * tile_hw
                      + 2 * C * K + K
                      + 2 * (K + 1))
    vmem_limit = int(min(100 * 2 ** 20, max(4 * 2 ** 20, 8 * per_step_elems)))

    cost = pl.CostEstimate(
        flops=2 * 2 * K * C * B * hw_pad,                # distance + gather matmuls
        transcendentals=0,
        bytes_accessed=4 * (2 * B * C * hw_pad + 2 * C * K + K
                            + B * grid_hw * (K + 1)))

    q, stats = pl.pallas_call(
        kernel,
        grid=(B, grid_hw),
        out_shape=(
            jax.ShapeDtypeStruct((B, C, hw_pad), jnp.float32),
            jax.ShapeDtypeStruct((B, grid_hw, K + 1, 1), jnp.float32),
        ),
        in_specs=[
            pl.BlockSpec((None, C, tile_hw), lambda b, i: (b, 0, i)),  # x tile
            pl.BlockSpec((C, K), lambda b, i: (0, 0)),                 # -2*E^T
            pl.BlockSpec((C, K), lambda b, i: (0, 0)),                 # E^T
            pl.BlockSpec((K, 1), lambda b, i: (0, 0)),                 # ||e||^2
        ],
        out_specs=(
            pl.BlockSpec((None, C, tile_hw), lambda b, i: (b, 0, i)),  # quantized
            pl.BlockSpec((None, None, K + 1, 1),
                         lambda b, i: (b, i, 0, 0)),                   # partials
        ),
        compiler_params=pltpu.CompilerParams(
            dimension_semantics=("parallel", "parallel"),
            vmem_limit_bytes=vmem_limit),
        cost_estimate=cost,
    )(x, neg2_embt, embt, e2)

    # tiny O(grid * K) finalization outside the kernel (grid stays parallel)
    counts = jnp.sum(stats[:, :, :K, 0], axis=(0, 1))    # (K,)
    sse = jnp.sum(stats[:, :, K, 0])
    mse = sse / jnp.float32(N * C)
    # forward values of q_latent and e_latent are both MSE(quant, z_e)
    loss = (1.0 + float(commitment_cost)) * mse

    avg_probs = counts / jnp.float32(N)
    perplexity = jnp.exp(-jnp.sum(avg_probs * jnp.log(avg_probs + 1e-10)))

    if hw_pad != hw:
        q = q[:, :, :hw]
    # straight-through forward value = quant; free reshape back to NCHW
    quantized = q.reshape(B, C, H, W)
    # TODO(synk): forward-only — no custom_vjp straight-through estimator, so
    # gradients will not match the PyTorch module if used for training.
    return quantized, loss, perplexity


if __name__ == "__main__":
    num_embeddings = 16      # K
    embedding_dim = 4        # C
    commitment_cost = 0.25

    key = jax.random.PRNGKey(0)
    k_emb, k_z = jax.random.split(key)

    # nn.init.uniform_(embedding.weight, -1/K, 1/K)
    embedding_weight = jax.random.uniform(
        k_emb, (num_embeddings, embedding_dim),
        minval=-1.0 / num_embeddings, maxval=1.0 / num_embeddings,
        dtype=jnp.float32)

    # z_e in NCHW; HW = 256 -> one 256-wide lane-dense tile per batch, grid (2, 1)
    z_e = jax.random.normal(k_z, (2, embedding_dim, 16, 16), dtype=jnp.float32)

    quantized, loss, perplexity = vector_quantizer_forward(
        z_e, embedding_weight, commitment_cost)
    jax.block_until_ready((quantized, loss, perplexity))

    assert quantized.shape == z_e.shape
    assert quantized.dtype == jnp.float32
    assert bool(jnp.isfinite(loss)) and bool(jnp.isfinite(perplexity))

    # correctness checks (robust to float tie-breaking):
    # 1) every quantized vector achieves the minimal distance to the codebook
    flat = jnp.transpose(z_e, (0, 2, 3, 1)).reshape(-1, embedding_dim)
    qcols = jnp.transpose(quantized, (0, 2, 3, 1)).reshape(-1, embedding_dim)
    d_all = jnp.sum((flat[:, None, :] - embedding_weight[None, :, :]) ** 2, axis=-1)
    d_min = jnp.min(d_all, axis=-1)
    d_sel = jnp.sum((qcols - flat) ** 2, axis=-1)
    assert float(jnp.max(d_sel - d_min)) < 1e-5
    # 2) loss matches (1 + commitment_cost) * MSE(quantized, z_e)
    loss_ref = (1.0 + commitment_cost) * jnp.mean((quantized - z_e) ** 2)
    assert abs(float(loss) - float(loss_ref)) < 1e-5
    # 3) perplexity matches counts recovered from the quantized output
    idx_rec = jnp.argmin(
        jnp.sum((qcols[:, None, :] - embedding_weight[None, :, :]) ** 2, axis=-1),
        axis=-1)
    probs = jnp.bincount(idx_rec, length=num_embeddings) / idx_rec.shape[0]
    perp_ref = jnp.exp(-jnp.sum(probs * jnp.log(probs + 1e-10)))
    assert abs(float(perplexity) - float(perp_ref)) < 1e-3

    print("KERNEL_OK")
</pallas_src>

<mosaic_0001>
module attributes {stable_mosaic.version = 11 : i64} {
  func.func @_vq_kernel(%arg0: i32, %arg1: i32, %arg2: memref<1x4x256xf32, #tpu.memory_space<vmem>>, %arg3: memref<4x16xf32, #tpu.memory_space<vmem>>, %arg4: memref<4x16xf32, #tpu.memory_space<vmem>>, %arg5: memref<16x1xf32, #tpu.memory_space<vmem>>, %arg6: memref<1x4x256xf32, #tpu.memory_space<vmem>>, %arg7: memref<1x1x17x1xf32, #tpu.memory_space<vmem>>) attributes {dimension_semantics = [#tpu.dimension_semantics<parallel>, #tpu.dimension_semantics<parallel>], iteration_bounds = array<i64: 2, 1>, scalar_prefetch = 0 : i64, scratch_operands = 0 : i64, tpu.core_type = #tpu.core_type<tc>, window_params = [{transform_indices = @transform_0, window_bounds = array<i64: 1, 4, 256>}, {pipeline_mode = #tpu.pipeline_mode<synchronous>, transform_indices = @transform_1, window_bounds = array<i64: 4, 16>}, {pipeline_mode = #tpu.pipeline_mode<synchronous>, transform_indices = @transform_2, window_bounds = array<i64: 4, 16>}, {pipeline_mode = #tpu.pipeline_mode<synchronous>, transform_indices = @transform_3, window_bounds = array<i64: 16, 1>}, {transform_indices = @transform_4, window_bounds = array<i64: 1, 4, 256>}, {transform_indices = @transform_5, window_bounds = array<i64: 1, 1, 17, 1>}]} {
    %c0 = arith.constant 0 : index
    %c0_0 = arith.constant 0 : index
    %c0_1 = arith.constant 0 : index
    %0 = vector.load %arg2[%c0, %c0_0, %c0_1] : memref<1x4x256xf32, #tpu.memory_space<vmem>>, vector<1x4x256xf32>
    %1 = vector.shape_cast %0 : vector<1x4x256xf32> to vector<4x256xf32>
    %c0_2 = arith.constant 0 : index
    %c0_3 = arith.constant 0 : index
    %2 = vector.load %arg3[%c0_2, %c0_3] : memref<4x16xf32, #tpu.memory_space<vmem>>, vector<4x16xf32>
    %cst = arith.constant dense<0.000000e+00> : vector<16x256xf32>
    %3 = tpu.matmul %2, %1, %cst {dimension_numbers = #tpu.dot_dimension_numbers<[0], [0], [1], [1], [0, 1, 1, 1], [], []>} : vector<4x16xf32>, vector<4x256xf32>, vector<16x256xf32> -> vector<16x256xf32>
    %c0_4 = arith.constant 0 : index
    %c0_5 = arith.constant 0 : index
    %4 = vector.load %arg5[%c0_4, %c0_5] : memref<16x1xf32, #tpu.memory_space<vmem>>, vector<16x1xf32>
    %5 = vector.broadcast %4 : vector<16x1xf32> to vector<16x256xf32>
    %6 = arith.addf %3, %5 : vector<16x256xf32>
    %7 = tpu.iota {dimensions = array<i32: 0>} : vector<16x1xi32>
    %cst_6 = arith.constant dense<0x7F800000> : vector<256xf32>
    %8 = vector.multi_reduction <minimumf>, %6, %cst_6 [0] : vector<16x256xf32> to vector<256xf32>
    %9 = vector.shape_cast %8 : vector<256xf32> to vector<1x256xf32>
    %10 = vector.broadcast %9 : vector<1x256xf32> to vector<16x256xf32>
    %11 = arith.cmpf ole, %6, %10 : vector<16x256xf32>
    %c16_i32 = arith.constant 16 : i32
    %12 = vector.shape_cast %7 : vector<16x1xi32> to vector<16x1xi32>
    %13 = vector.broadcast %12 : vector<16x1xi32> to vector<16x256xi32>
    %14 = vector.broadcast %c16_i32 : i32 to vector<16x256xi32>
    %15 = arith.select %11, %13, %14 : vector<16x256xi1>, vector<16x256xi32>
    %cst_7 = arith.constant dense<2147483647> : vector<256xi32>
    %16 = vector.multi_reduction <minsi>, %15, %cst_7 [0] : vector<16x256xi32> to vector<256xi32>
    %17 = vector.shape_cast %16 : vector<256xi32> to vector<1x256xi32>
    %18 = vector.broadcast %7 : vector<16x1xi32> to vector<16x256xi32>
    %19 = vector.broadcast %17 : vector<1x256xi32> to vector<16x256xi32>
    %20 = arith.cmpi eq, %18, %19 : vector<16x256xi32>
    %21 = arith.extui %20 : vector<16x256xi1> to vector<16x256xi32>
    %22 = arith.sitofp %21 : vector<16x256xi32> to vector<16x256xf32>
    %c0_8 = arith.constant 0 : index
    %c0_9 = arith.constant 0 : index
    %23 = vector.load %arg4[%c0_8, %c0_9] : memref<4x16xf32, #tpu.memory_space<vmem>>, vector<4x16xf32>
    %cst_10 = arith.constant dense<0.000000e+00> : vector<4x256xf32>
    %24 = tpu.matmul %23, %22, %cst_10 {dimension_numbers = #tpu.dot_dimension_numbers<[1], [0], [0], [1], [0, 0, 1, 1], [], []>} : vector<4x16xf32>, vector<16x256xf32>, vector<4x256xf32> -> vector<4x256xf32>
    %c0_11 = arith.constant 0 : index
    %c0_12 = arith.constant 0 : index
    %c0_13 = arith.constant 0 : index
    %25 = vector.load %arg6[%c0_11, %c0_12, %c0_13] : memref<1x4x256xf32, #tpu.memory_space<vmem>>, vector<1x4x256xf32>
    %26 = vector.shape_cast %25 : vector<1x4x256xf32> to vector<4x256xf32>
    %27 = vector.shape_cast %24 : vector<4x256xf32> to vector<1x4x256xf32>
    tpu.vector_store %arg6[%c0_11, %c0_12, %c0_13], %27 {strides = array<i32>} : memref<1x4x256xf32, #tpu.memory_space<vmem>>, vector<1x4x256xf32>,
    %28 = arith.subf %24, %1 : vector<4x256xf32>
    %cst_14 = arith.constant dense<0.000000e+00> : vector<16xf32>
    %29 = vector.multi_reduction <add>, %22, %cst_14 [1] : vector<16x256xf32> to vector<16xf32>
    %30 = vector.shape_cast %29 : vector<16xf32> to vector<16x1xf32>
    %c0_15 = arith.constant 0 : index
    %c0_16 = arith.constant 0 : index
    %c0_17 = arith.constant 0 : index
    %c0_18 = arith.constant 0 : index
    %31 = vector.load %arg7[%c0_15, %c0_16, %c0_17, %c0_18] : memref<1x1x17x1xf32, #tpu.memory_space<vmem>>, vector<1x1x16x1xf32>
    %32 = vector.shape_cast %31 : vector<1x1x16x1xf32> to vector<16x1xf32>
    %33 = vector.shape_cast %30 : vector<16x1xf32> to vector<1x1x16x1xf32>
    tpu.vector_store %arg7[%c0_15, %c0_16, %c0_17, %c0_18], %33 {strides = array<i32>} : memref<1x1x17x1xf32, #tpu.memory_space<vmem>>, vector<1x1x16x1xf32>,
    %34 = arith.mulf %28, %28 : vector<4x256xf32>
    %35 = vector.shape_cast %34 : vector<4x256xf32> to vector<1x4x256xf32>
    %cst_19 = arith.constant dense<0.000000e+00> : vector<1xf32>
    %36 = vector.multi_reduction <add>, %35, %cst_19 [1, 2] : vector<1x4x256xf32> to vector<1xf32>
    %37 = vector.shape_cast %36 : vector<1xf32> to vector<1x1x1xf32>
    %38 = vector.extract %37[0, 0, 0] : f32 from vector<1x1x1xf32>
    %39 = vector.broadcast %38 : f32 to vector<1x1xf32>
    %c0_20 = arith.constant 0 : index
    %c0_21 = arith.constant 0 : index
    %c16 = arith.constant 16 : index
    %c0_22 = arith.constant 0 : index
    %40 = vector.load %arg7[%c0_20, %c0_21, %c16, %c0_22] : memref<1x1x17x1xf32, #tpu.memory_space<vmem>>, vector<1x1x1x1xf32>
    %41 = vector.shape_cast %40 : vector<1x1x1x1xf32> to vector<1x1xf32>
    %42 = vector.shape_cast %39 : vector<1x1xf32> to vector<1x1x1x1xf32>
    tpu.vector_store %arg7[%c0_20, %c0_21, %c16, %c0_22], %42 {strides = array<i32>} : memref<1x1x17x1xf32, #tpu.memory_space<vmem>>, vector<1x1x1x1xf32>,
    return
  }
  func.func @transform_0(%arg0: i32, %arg1: i32) -> (i32, i32, i32) {
    %c0_i32 = arith.constant 0 : i32
    %c0_i32_0 = arith.constant 0 : i32
    return %arg0, %c0_i32, %arg1 : i32, i32, i32
  }
  func.func @transform_1(%arg0: i32, %arg1: i32) -> (i32, i32) {
    %c0_i32 = arith.constant 0 : i32
    %c0_i32_0 = arith.constant 0 : i32
    %c0_i32_1 = arith.constant 0 : i32
    return %c0_i32, %c0_i32_0 : i32, i32
  }
  func.func @transform_2(%arg0: i32, %arg1: i32) -> (i32, i32) {
    %c0_i32 = arith.constant 0 : i32
    %c0_i32_0 = arith.constant 0 : i32
    %c0_i32_1 = arith.constant 0 : i32
    return %c0_i32, %c0_i32_0 : i32, i32
  }
  func.func @transform_3(%arg0: i32, %arg1: i32) -> (i32, i32) {
    %c0_i32 = arith.constant 0 : i32
    %c0_i32_0 = arith.constant 0 : i32
    %c0_i32_1 = arith.constant 0 : i32
    return %c0_i32, %c0_i32_0 : i32, i32
  }
  func.func @transform_4(%arg0: i32, %arg1: i32) -> (i32, i32, i32) {
    %c0_i32 = arith.constant 0 : i32
    %c0_i32_0 = arith.constant 0 : i32
    return %arg0, %c0_i32, %arg1 : i32, i32, i32
  }
  func.func @transform_5(%arg0: i32, %arg1: i32) -> (i32, i32, i32, i32) {
    %c0_i32 = arith.constant 0 : i32
    %c0_i32_0 = arith.constant 0 : i32
    %c0_i32_1 = arith.constant 0 : i32
    return %arg0, %arg1, %c0_i32, %c0_i32_0 : i32, i32, i32, i32
  }
}

</mosaic_0001>

<llo_original>
// kernel: tpu_custom_call.1
$region0: #{tpu_custom_call.1}
  #allocation0 [shape = 'u32[]', space=smem, size = 0x4, offset = 0x4, fixed_abs, tag = 'smem constant byte address 0x4 - core index']
  #allocation1 [shape = 'u32[144,128]{1,0:T(1,128)}', space=vmem, size = 0x12000, scoped, tag = 'internal scratch']
  %s0 = inlined_call_operand.vmem [shape: f32[2,4,256], index: 0, kind: input, shape index: {}]
  %s1 = inlined_call_operand.vmem [shape: f32[4,16], index: 1, kind: input, shape index: {}]
  %s2 = inlined_call_operand.vmem [shape: f32[4,16], index: 2, kind: input, shape index: {}]
  %s3 = inlined_call_operand.vmem [shape: f32[16,1], index: 3, kind: input, shape index: {}]
  %s4 = inlined_call_operand.hbm [shape: f32[2,4,256], index: 4, kind: output, shape index: {0}]
  %s5 = inlined_call_operand.vmem [shape: f32[2,1,17,1], index: 5, kind: output, shape index: {1}]
  %6 = xla_tuple %s4, %s5
  %s7 = sld [smem:[#allocation0]]
  $region57: #{tpu_custom_call.1} parent=0
    _
  %s9 = ssub.s32 1, %s7
  %s10 = scalar_select 0, %s9, %s7
  $region1: #{tpu_custom_call.1} parent=0
    #allocation2 [shape = 'u8[8192]{0}', space=vmem, size = 0x2000, scoped, tag = 'output window, operand 0']
    #allocation3 [shape = 's32[2]{0}', space=sflag, size = 0x8, scoped, tag = 'scoped memory for tpu_custom_call.1']
    %11 = vsyncpa [#allocation3], 0
    %s12 = scalar_lea.sflag [#allocation3], 1
    %13 = vsyncpa %s12, 0
    loop: start=0, step=1, limit=4
    $region2: #{tpu_custom_call.1} parent=1 // loop_pre_header
      _
    $region3: #{tpu_custom_call.1} parent=1 // loop_header
      %s15 = sphi 0, %s19
      %p16 = scmp.ge.s32.totalorder %s15, 4
      %s22 = sphi 0, %s34
      %s23 = sphi 0, %s30
      %s24 = sphi 0, %s22
      %s25 = sphi 0, %s23
      %s26 = sphi 0, %s24
      %s27 = sphi 0, %s25
      %s39 = sphi 0, %s41
      %s42 = sphi 0, %s39
      %s43 = sphi 0, %s42
      %s59 = sphi 0, %s43
      %s63 = sphi 0, %s63
      %s65 = sphi 0, %s63
      %s66 = sphi 0, %s65
      %s80 = sphi 0, %s66
      %s84 = sphi 0, %s84
      %s86 = sphi 0, %s84
      %s87 = sphi 0, %s86
      %s101 = sphi 0, %s87
      %s105 = sphi 0, %s105
      %s107 = sphi 0, %s105
      %s108 = sphi 0, %s107
      %s122 = sphi 0, %s108
      %s130 = sphi 0, %s132
      %s133 = sphi 0, %s130
      %s134 = sphi 0, %s133
      %s150 = sphi 0, %s134
      %s158 = sphi 0, %s160
      %s161 = sphi 0, %s158
      %s162 = sphi 0, %s161
      %s178 = sphi 0, %s162
    $region4: #{tpu_custom_call.1} parent=1 // loop_header_branch
      %18 = sbr.rel (%p16) target = $region8
    $region5: #{tpu_custom_call.1} parent=1 // loop_body
      %s20 = ssub.s32 %s15, 1
      %s21 = ssub.s32 %s15, 2
      %s28 = sadd.s32 1, %s23
      %p29 = scmp.ge.s32.totalorder %s28, 1
      %s30 = scalar_select %p29, 0, %s28
      %s31 = sadd.s32 1, %s22
      %s32 = scalar_select %p29, %s31, %s22
      %p33 = scmp.ge.s32.totalorder %s32, 2
      %s34 = scalar_select %p33, 0, %s32
      %s35 = ssub.s32 %s22, %s34
      %s36 = ssub.s32 %s23, %s30
      %s37 = sor.u32 %s35, %s36
      %p38 = scmp.eq.s32.totalorder %s37, 0
      %s40 = sadd.s32 %s39, 1
      %s41 = scalar_select %p38, %s39, %s40
      %p44 = pneg %p38
      %p45 = scmp.eq.s32.totalorder %s15, 1
      %p46 = por %p44, %p45
      %p47 = scmp.ne.s32.totalorder %s39, %s42
      %p48 = scmp.eq.s32.totalorder %s15, 0
      %p49 = por %p47, %p48
      %p50 = scmp.ne.s32.totalorder %s39, %s42
      %p51 = scmp.eq.s32.totalorder %s20, 1
      %p52 = por %p50, %p51
      %p53 = scmp.ne.s32.totalorder %s42, %s43
      %p54 = scmp.eq.s32.totalorder %s20, 0
      %p55 = por %p53, %p54
      %p56 = scmp.ne.s32.totalorder %s42, %s43
      %p57 = scmp.eq.s32.totalorder %s21, 1
      %p58 = por %p56, %p57
      %p60 = scmp.ne.s32.totalorder %s43, %s59
      %p61 = scmp.eq.s32.totalorder %s21, 0
      %p62 = por %p60, %p61
      %s64 = sadd.s32 %s63, 1
      %p67 = scmp.eq.s32.totalorder %s15, 1
      %p68 = scmp.ne.s32.totalorder %s63, %s65
      %p69 = scmp.eq.s32.totalorder %s15, 0
      %p70 = por %p68, %p69
      %p71 = scmp.ne.s32.totalorder %s63, %s65
      %p72 = scmp.eq.s32.totalorder %s20, 1
      %p73 = por %p71, %p72
      %p74 = scmp.ne.s32.totalorder %s65, %s66
      %p75 = scmp.eq.s32.totalorder %s20, 0
      %p76 = por %p74, %p75
      %p77 = scmp.ne.s32.totalorder %s65, %s66
      %p78 = scmp.eq.s32.totalorder %s21, 1
      %p79 = por %p77, %p78
      %p81 = scmp.ne.s32.totalorder %s66, %s80
      %p82 = scmp.eq.s32.totalorder %s21, 0
      %p83 = por %p81, %p82
      %s85 = sadd.s32 %s84, 1
      %p88 = scmp.eq.s32.totalorder %s15, 1
      %p89 = scmp.ne.s32.totalorder %s84, %s86
      %p90 = scmp.eq.s32.totalorder %s15, 0
      %p91 = por %p89, %p90
      %p92 = scmp.ne.s32.totalorder %s84, %s86
      %p93 = scmp.eq.s32.totalorder %s20, 1
      %p94 = por %p92, %p93
      %p95 = scmp.ne.s32.totalorder %s86, %s87
      %p96 = scmp.eq.s32.totalorder %s20, 0
      %p97 = por %p95, %p96
      %p98 = scmp.ne.s32.totalorder %s86, %s87
      %p99 = scmp.eq.s32.totalorder %s21, 1
      %p100 = por %p98, %p99
      %p102 = scmp.ne.s32.totalorder %s87, %s101
      %p103 = scmp.eq.s32.totalorder %s21, 0
      %p104 = por %p102, %p103
      %s106 = sadd.s32 %s105, 1
      %p109 = scmp.eq.s32.totalorder %s15, 1
      %p110 = scmp.ne.s32.totalorder %s105, %s107
      %p111 = scmp.eq.s32.totalorder %s15, 0
      %p112 = por %p110, %p111
      %p113 = scmp.ne.s32.totalorder %s105, %s107
      %p114 = scmp.eq.s32.totalorder %s20, 1
      %p115 = por %p113, %p114
      %p116 = scmp.ne.s32.totalorder %s107, %s108
      %p117 = scmp.eq.s32.totalorder %s20, 0
      %p118 = por %p116, %p117
      %p119 = scmp.ne.s32.totalorder %s107, %s108
      %p120 = scmp.eq.s32.totalorder %s21, 1
      %p121 = por %p119, %p120
      %p123 = scmp.ne.s32.totalorder %s108, %s122
      %p124 = scmp.eq.s32.totalorder %s21, 0
      %p125 = por %p123, %p124
      %s126 = ssub.s32 %s22, %s34
      %s127 = ssub.s32 %s23, %s30
      %s128 = sor.u32 %s126, %s127
      %p129 = scmp.eq.s32.totalorder %s128, 0
      %s131 = sadd.s32 %s130, 1
      %s132 = scalar_select %p129, %s130, %s131
      %p135 = pneg %p129
      %p136 = scmp.eq.s32.totalorder %s15, 1
      %p137 = por %p135, %p136
      %p138 = scmp.ne.s32.totalorder %s130, %s133
      %p139 = scmp.eq.s32.totalorder %s15, 0
      %p140 = por %p138, %p139
      %p141 = scmp.ne.s32.totalorder %s130, %s133
      %p142 = scmp.eq.s32.totalorder %s20, 1
      %p143 = por %p141, %p142
      %p144 = scmp.ne.s32.totalorder %s133, %s134
      %p145 = scmp.eq.s32.totalorder %s20, 0
      %p146 = por %p144, %p145
      %p147 = scmp.ne.s32.totalorder %s133, %s134
      %p148 = scmp.eq.s32.totalorder %s21, 1
      %p149 = por %p147, %p148
      %p151 = scmp.ne.s32.totalorder %s134, %s150
      %p152 = scmp.eq.s32.totalorder %s21, 0
      %p153 = por %p151, %p152
      %s154 = ssub.s32 %s22, %s34
      %s155 = ssub.s32 %s23, %s30
      %s156 = sor.u32 %s154, %s155
      %p157 = scmp.eq.s32.totalorder %s156, 0
      %s159 = sadd.s32 %s158, 1
      %s160 = scalar_select %p157, %s158, %s159
      %p163 = pneg %p157
      %p164 = scmp.eq.s32.totalorder %s15, 1
      %p165 = por %p163, %p164
      %p166 = scmp.ne.s32.totalorder %s158, %s161
      %p167 = scmp.eq.s32.totalorder %s15, 0
      %p168 = por %p166, %p167
      %p169 = scmp.ne.s32.totalorder %s158, %s161
      %p170 = scmp.eq.s32.totalorder %s20, 1
      %p171 = por %p169, %p170
      %p172 = scmp.ne.s32.totalorder %s161, %s162
      %p173 = scmp.eq.s32.totalorder %s20, 0
      %p174 = por %p172, %p173
      %p175 = scmp.ne.s32.totalorder %s161, %s162
      %p176 = scmp.eq.s32.totalorder %s21, 1
      %p177 = por %p175, %p176
      %p179 = scmp.ne.s32.totalorder %s162, %s178
      %p180 = scmp.eq.s32.totalorder %s21, 0
      %p181 = por %p179, %p180
      %p182 = scmp.le.s32.totalorder 1, %s15
      %p183 = scmp.lt.s32.totalorder %s15, 3
      %p184 = pnand %p182, %p183
      %p185 = pneg %p184
      // Predicated region
      $region9: #{tpu_custom_call.1} parent=5 // pred_check
        _
      $region10: #{tpu_custom_call.1} parent=5 // pred_check_branch
        %187 = sbr.rel (%p184) target = $region12
      $region11: #{tpu_custom_call.1} parent=5 // pred_region
        %s188 = ssub.s32 %s15, 1
        // Predicated region
        $region13: #{tpu_custom_call.1} parent=11 // pred_check
          %p189 = pneg %p76
        $region14: #{tpu_custom_call.1} parent=11 // pred_check_branch
          %191 = sbr.rel (%p189) target = $region16
        $region15: #{tpu_custom_call.1} parent=11 // pred_region
          _
        $region16: #{tpu_custom_call.1} parent=11 // pred_fallthru
          _
        // Predicated region
        $region17: #{tpu_custom_call.1} parent=11 // pred_check
          %p192 = pneg %p97
        $region18: #{tpu_custom_call.1} parent=11 // pred_check_branch
          %194 = sbr.rel (%p192) target = $region20
        $region19: #{tpu_custom_call.1} parent=11 // pred_region
          _
        $region20: #{tpu_custom_call.1} parent=11 // pred_fallthru
          _
        // Predicated region
        $region21: #{tpu_custom_call.1} parent=11 // pred_check
          %p195 = pneg %p118
        $region22: #{tpu_custom_call.1} parent=11 // pred_check_branch
          %197 = sbr.rel (%p195) target = $region24
        $region23: #{tpu_custom_call.1} parent=11 // pred_region
          _
        $region24: #{tpu_custom_call.1} parent=11 // pred_fallthru
          _
      $region12: #{tpu_custom_call.1} parent=5 // pred_fallthru
        _
      %p198 = scmp.lt.s32.totalorder %s15, 2
      // Predicated region
      $region25: #{tpu_custom_call.1} parent=5 // pred_check
        %p199 = pneg %p198
      $region26: #{tpu_custom_call.1} parent=5 // pred_check_branch
        %201 = sbr.rel (%p199) target = $region28
      $region27: #{tpu_custom_call.1} parent=5 // pred_region
        // Predicated region
        $region29: #{tpu_custom_call.1} parent=27 // pred_check
          %p202 = pneg %p49
        $region30: #{tpu_custom_call.1} parent=27 // pred_check_branch
          %204 = sbr.rel (%p202) target = $region32
        $region31: #{tpu_custom_call.1} parent=27 // pred_region
          %s205 = smul.u32 2, %s23
          %p206 = scmp.lt.s32.totalorder %s22, 1
          %s207 = scalar_select %p206, %s22, 1
          %p208 = scmp.lt.s32.totalorder %s205, 1
          %s209 = scalar_select %p208, %s205, 1
          %s210 = smul.addr %s207, 2
          %s211 = sadd.s32 %s209, %s210
          %s212 = smul.addr %s211, 4
          %s213 = scalar_lea.vmem %s0, %s212
          %s214 = smul.u32 2, %s23
        $region32: #{tpu_custom_call.1} parent=27 // pred_fallthru
          _
      $region28: #{tpu_custom_call.1} parent=5 // pred_fallthru
        _
      %p215 = scmp.le.s32.totalorder 1, %s15
      %p216 = scmp.lt.s32.totalorder %s15, 3
      %p217 = pnand %p215, %p216
      %p218 = pneg %p217
      // Predicated region
      $region33: #{tpu_custom_call.1} parent=5 // pred_check
        _
      $region34: #{tpu_custom_call.1} parent=5 // pred_check_branch
        %220 = sbr.rel (%p217) target = $region36
      $region35: #{tpu_custom_call.1} parent=5 // pred_region
        %s221 = ssub.s32 %s15, 1
        %s222 = smul.u32 2, %s25
        %p223 = scmp.lt.s32.totalorder %s24, 1
        %s224 = scalar_select %p223, %s24, 1
        %p225 = scmp.lt.s32.totalorder %s222, 1
        %s226 = scalar_select %p225, %s222, 1
        %s227 = smul.addr %s224, 2
        %s228 = sadd.s32 %s226, %s227
        %s229 = smul.addr %s228, 4
        %s230 = scalar_lea.vmem %s0, %s229
        %p231 = pneg %p55
        %p232 = pneg %p52
        %p233 = pneg %p76
        %p234 = pneg %p73
        %p235 = pneg %p97
        %p236 = pneg %p94
        %p237 = pneg %p118
        %p238 = pneg %p115
        %p239 = pneg %p146
        %p240 = pneg %p143
        %s241 = sand.u32 %s133, 1
        %s242 = scalar_lea.sflag [#allocation3], %s241
        %s243 = sand.u32 %s133, 1
        %s244 = smul.addr %s243, 8
        %s245 = scalar_lea.vmem [#allocation2], %s244
        %p246 = pneg %p174
        %p247 = pneg %p171
        %p248 = scmp.lt.s32.totalorder %s24, 1
        %s249 = scalar_select %p248, %s24, 1
        %p250 = scmp.lt.s32.totalorder %s25, 0
        %s251 = scalar_select %p250, %s25, 0
        %s252 = smul.addr %s251, 3
        %s253 = smul.addr %s249, 3
        %s254 = sadd.s32 %s252, %s253
        %s255 = smul.addr %s254, 8
        %s256 = scalar_lea.vmem %s5, %s255
        %s257 = smul.u32 2, %s25
        %p258 = scmp.lt.s32.totalorder %s24, 1
        %s259 = scalar_select %p258, %s24, 1
        %p260 = scmp.lt.s32.totalorder %s257, 1
        %s261 = scalar_select %p260, %s257, 1
        %s262 = smul.addr %s259, 2
        %s263 = sadd.s32 %s261, %s262
        %s264 = smul.addr %s263, 4
        %s265 = scalar_lea.vmem %s0, %s264
        %s266 = smul.u32 2, %s25
        %s267 = smul.u32 2, %s25
        %p268 = scmp.lt.s32.totalorder %s24, 1
        %s269 = scalar_select %p268, %s24, 1
        %p270 = scmp.lt.s32.totalorder %s25, 0
        %s271 = scalar_select %p270, %s25, 0
        %s272 = smul.addr %s271, 3
        %s273 = smul.addr %s269, 3
        %s274 = sadd.s32 %s272, %s273
        %s275 = smul.addr %s274, 8
        %s276 = scalar_lea.vmem %s5, %s275
        %v277 = vld [vmem:[%s265] sm:$0xff]
        %v278 = vld [vmem:[%s1] sm:$0xf]
        %v279 = vld [vmem:[%s3] sm:$0xff]
        %v280 = vld [vmem:[%s3 + $0x8] sm:$0xff]
        %282 = vset.pattern.permute.xlu0 0
        %283 = vperm.xlu0 %282, %v279
        %v284 = vpop.permute.xlu0 %283
        %287 = vset.pattern.permute.xlu0 0
        %288 = vperm.xlu0 %287, %v280
        %v289 = vpop.permute.xlu0 %288
        %291 = vxpose.xlu0.b32.start [1/16] %v278, 128
        %292 = vxpose.xlu0.b32.cont [2/16] 0.0, 128
        %293 = vxpose.xlu0.b32.cont [3/16] 0.0, 128
        %294 = vxpose.xlu0.b32.cont [4/16] 0.0, 128
        %295 = vxpose.xlu0.b32.cont [5/16] 0.0, 128
        %296 = vxpose.xlu0.b32.cont [6/16] 0.0, 128
        %297 = vxpose.xlu0.b32.cont [7/16] 0.0, 128
        %298 = vxpose.xlu0.b32.cont [8/16] 0.0, 128
        %299 = vxpose.xlu0.b32.cont [9/16] 0.0, 128
        %300 = vxpose.xlu0.b32.cont [10/16] 0.0, 128
        %301 = vxpose.xlu0.b32.cont [11/16] 0.0, 128
        %302 = vxpose.xlu0.b32.cont [12/16] 0.0, 128
        %303 = vxpose.xlu0.b32.cont [13/16] 0.0, 128
        %304 = vxpose.xlu0.b32.cont [14/16] 0.0, 128
        %305 = vxpose.xlu0.b32.cont [15/16] 0.0, 128
        %306 = vxpose.xlu0.b32.end [16/16] 0.0, 128
        %v307 = vpop.trf.xlu0
        %v308 = vpop.trf.xlu0
        %v309 = vpop.trf.xlu0
        %v310 = vpop.trf.xlu0
        %v311 = vpop.trf.xlu0
        %v312 = vpop.trf.xlu0
        %v313 = vpop.trf.xlu0
        %v314 = vpop.trf.xlu0
        %v315 = vpop.trf.xlu0
        %v316 = vpop.trf.xlu0
        %v317 = vpop.trf.xlu0
        %v318 = vpop.trf.xlu0
        %v319 = vpop.trf.xlu0
        %v320 = vpop.trf.xlu0
        %v321 = vpop.trf.xlu0
        %v322 = vpop.trf.xlu0
        %v324 = vcombine.high %v277, %v277
        %vm325 = vcmask 31744
        %v327 = vsel %vm325, %v307, 0
        %v330 = vsel %vm325, %v308, 0
        %vm332 = vcmask 1043456
        %v333 = vsel %vm332, %v277, 0
        %v335 = vsel %vm332, %v324, 0
        %337 = vmatprep.subr.mxu0 %v335
        %338 = vmatpush1.msra.mxu0 %v333
        %339 = vmatprep.subr.mxu0 0.0
        %340 = vmatpush1.msra.mxu0 0.0
        %341 = vmatprep.subr.mxu0 0.0
        %342 = vmatpush1.msra.mxu0 0.0
        %343 = vmatprep.subr.mxu0 0.0
        %344 = vmatpush1.msra.mxu0 0.0
        %345 = vmatprep.subr.mxu0 0.0
        %346 = vmatpush1.msra.mxu0 0.0
        %347 = vmatprep.subr.mxu0 0.0
        %348 = vmatpush1.msra.mxu0 0.0
        %349 = vmatprep.subr.mxu0 0.0
        %350 = vmatpush1.msra.mxu0 0.0
        %351 = vmatprep.subr.mxu0 0.0
        %352 = vmatpush1.msra.mxu0 0.0
        %353 = vmatprep.subr.mxu0 0.0
        %354 = vmatpush1.msra.mxu0 0.0
        %355 = vmatprep.subr.mxu0 0.0
        %356 = vmatpush1.msra.mxu0 0.0
        %357 = vmatprep.subr.mxu0 0.0
        %358 = vmatpush1.msra.mxu0 0.0
        %359 = vmatprep.subr.mxu0 0.0
        %360 = vmatpush1.msra.mxu0 0.0
        %361 = vmatprep.subr.mxu0 0.0
        %362 = vmatpush1.msra.mxu0 0.0
        %363 = vmatprep.subr.mxu0 0.0
        %364 = vmatpush1.msra.mxu0 0.0
        %365 = vmatprep.subr.mxu0 0.0
        %366 = vmatpush1.msra.mxu0 0.0
        %367 = vmatprep.subr.mxu0 0.0
        %368 = vmatpush1.msra.mxu0 0.0
        %369 = vmatprep.subr.mxu0 0.0
        %370 = vmatpush1.msra.mxu0 0.0
        %371 = vmatprep.subr.mxu0 0.0
        %372 = vmatpush1.msra.mxu0 0.0
        %373 = vmatprep.subr.mxu0 0.0
        %374 = vmatpush1.msra.mxu0 0.0
        %375 = vmatprep.subr.mxu0 0.0
        %376 = vmatpush1.msra.mxu0 0.0
        %377 = vmatprep.subr.mxu0 0.0
        %378 = vmatpush1.msra.mxu0 0.0
        %379 = vmatprep.subr.mxu0 0.0
        %380 = vmatpush1.msra.mxu0 0.0
        %381 = vmatprep.subr.mxu0 0.0
        %382 = vmatpush1.msra.mxu0 0.0
        %383 = vmatprep.subr.mxu0 0.0
        %384 = vmatpush1.msra.mxu0 0.0
        %385 = vmatprep.subr.mxu0 0.0
        %386 = vmatpush1.msra.mxu0 0.0
        %387 = vmatprep.subr.mxu0 0.0
        %388 = vmatpush1.msra.mxu0 0.0
        %389 = vmatprep.subr.mxu0 0.0
        %390 = vmatpush1.msra.mxu0 0.0
        %391 = vmatprep.subr.mxu0 0.0
        %392 = vmatpush1.msra.mxu0 0.0
        %393 = vmatprep.subr.mxu0 0.0
        %394 = vmatpush1.msra.mxu0 0.0
        %395 = vmatprep.subr.mxu0 0.0
        %396 = vmatpush1.msra.mxu0 0.0
        %397 = vmatprep.subr.mxu0 0.0
        %398 = vmatpush1.msra.mxu0 0.0
        %399 = vmatprep.subr.mxu0 0.0
        %400 = vmatpush1.msra.mxu0 0.0
        %401 = vmatprep.mubr.f32.mxu0 0.0
        %402 = vmatmul.mubr.f32.gmra.mrb[0].mxu0 %v327
        %v403 = vpop.f32.mrb[0].mxu0
        %v404 = vadd.f32 %v284, %v403
        %v405 = vpop.f32.mrb[0].mxu0
        %v406 = vadd.f32 %v284, %v405
        %407 = vmatprep.mubr.f32.mxu0 0.0
        %408 = vmatmul.mubr.f32.gmra.mrb[0].mxu0 %v330
        %v409 = vpop.f32.mrb[0].mxu0
        %v410 = vadd.f32 %v289, %v409
        %v411 = vpop.f32.mrb[0].mxu0
        %v412 = vadd.f32 %v289, %v411
        %413 = vdwg.mxu0
        %v414 = vlaneseq
        %v415 = vshrl.u32 %v414, 7
        %v416 = vadd.s32 %v415, 8
        %v417 = vmin.f32 %v404, %v410
        %v418 = vrot.slane %v417, 4
        %v419 = vmin.f32 %v417, %v418
        %v420 = vrot.slane %v419, 2
        %v421 = vmin.f32 %v419, %v420
        %v422 = vrot.slane %v421, 1
        %v423 = vmin.f32 %v421, %v422
        %v424 = vmin.f32 %v406, %v412
        %v425 = vrot.slane %v424, 4
        %v426 = vmin.f32 %v424, %v425
        %v427 = vrot.slane %v426, 2
        %v428 = vmin.f32 %v426, %v427
        %v429 = vrot.slane %v428, 1
        %v430 = vmin.f32 %v428, %v429
        %vm431 = vcmp.le.f32.partialorder %v404, %v423
        %vm432 = vcmp.le.f32.partialorder %v406, %v430
        %vm433 = vcmp.le.f32.partialorder %v410, %v423
        %vm434 = vcmp.le.f32.partialorder %v412, %v430
        %v435 = vsel %vm431, %v415, 16
        %v436 = vsel %vm432, %v415, 16
        %v437 = vsel %vm433, %v416, 16
        %v438 = vsel %vm434, %v416, 16
        %vm439 = vcmp.lt.s32.totalorder %v435, %v437
        %v440 = vsel %vm439, %v435, %v437
        %v441 = vrot.slane %v440, 4
        %vm442 = vcmp.lt.s32.totalorder %v440, %v441
        %v443 = vsel %vm442, %v440, %v441
        %v444 = vrot.slane %v443, 2
        %vm445 = vcmp.lt.s32.totalorder %v443, %v444
        %v446 = vsel %vm445, %v443, %v444
        %v447 = vrot.slane %v446, 1
        %vm448 = vcmp.lt.s32.totalorder %v446, %v447
        %v449 = vsel %vm448, %v446, %v447
        %vm450 = vcmp.lt.s32.totalorder %v436, %v438
        %v451 = vsel %vm450, %v436, %v438
        %v452 = vrot.slane %v451, 4
        %vm453 = vcmp.lt.s32.totalorder %v451, %v452
        %v454 = vsel %vm453, %v451, %v452
        %v455 = vrot.slane %v454, 2
        %vm456 = vcmp.lt.s32.totalorder %v454, %v455
        %v457 = vsel %vm456, %v454, %v455
        %v458 = vrot.slane %v457, 1
        %vm459 = vcmp.lt.s32.totalorder %v457, %v458
        %v460 = vsel %vm459, %v457, %v458
        %vm461 = vcmp.eq.s32.totalorder %v415, %v449
        %vm462 = vcmp.eq.s32.totalorder %v415, %v460
        %vm463 = vcmp.eq.s32.totalorder %v416, %v449
        %vm464 = vcmp.eq.s32.totalorder %v416, %v460
        %v465 = vsel %vm461, 1, 0
        %v466 = vsel %vm462, 1, 0
        %v467 = vsel %vm463, 1, 0
        %v468 = vsel %vm464, 1, 0
        %v469 = vcvt.s32.f32 %v465
        %v470 = vcvt.s32.f32 %v466
        %v471 = vcvt.s32.f32 %v467
        %v472 = vcvt.s32.f32 %v468
        %v473 = vld [vmem:[%s2] sm:$0xf]
        %vm474 = vcmask 130048
        %v476 = vsel %vm474, %v473, 0
        %478 = vmatprep.subr.mxu0 %v470
        %479 = vmatpush1.msra.mxu0 %v469
        %480 = vmatprep.subr.mxu0 %v472
        %481 = vmatpush1.msra.mxu0 %v471
        %482 = vmatprep.subr.mxu0 0.0
        %483 = vmatpush1.msra.mxu0 0.0
        %484 = vmatprep.subr.mxu0 0.0
        %485 = vmatpush1.msra.mxu0 0.0
        %486 = vmatprep.subr.mxu0 0.0
        %487 = vmatpush1.msra.mxu0 0.0
        %488 = vmatprep.subr.mxu0 0.0
        %489 = vmatpush1.msra.mxu0 0.0
        %490 = vmatprep.subr.mxu0 0.0
        %491 = vmatpush1.msra.mxu0 0.0
        %492 = vmatprep.subr.mxu0 0.0
        %493 = vmatpush1.msra.mxu0 0.0
        %494 = vmatprep.subr.mxu0 0.0
        %495 = vmatpush1.msra.mxu0 0.0
        %496 = vmatprep.subr.mxu0 0.0
        %497 = vmatpush1.msra.mxu0 0.0
        %498 = vmatprep.subr.mxu0 0.0
        %499 = vmatpush1.msra.mxu0 0.0
        %500 = vmatprep.subr.mxu0 0.0
        %501 = vmatpush1.msra.mxu0 0.0
        %502 = vmatprep.subr.mxu0 0.0
        %503 = vmatpush1.msra.mxu0 0.0
        %504 = vmatprep.subr.mxu0 0.0
        %505 = vmatpush1.msra.mxu0 0.0
        %506 = vmatprep.subr.mxu0 0.0
        %507 = vmatpush1.msra.mxu0 0.0
        %508 = vmatprep.subr.mxu0 0.0
        %509 = vmatpush1.msra.mxu0 0.0
        %510 = vmatprep.subr.mxu0 0.0
        %511 = vmatpush1.msra.mxu0 0.0
        %512 = vmatprep.subr.mxu0 0.0
        %513 = vmatpush1.msra.mxu0 0.0
        %514 = vmatprep.subr.mxu0 0.0
        %515 = vmatpush1.msra.mxu0 0.0
        %516 = vmatprep.subr.mxu0 0.0
        %517 = vmatpush1.msra.mxu0 0.0
        %518 = vmatprep.subr.mxu0 0.0
        %519 = vmatpush1.msra.mxu0 0.0
        %520 = vmatprep.subr.mxu0 0.0
        %521 = vmatpush1.msra.mxu0 0.0
        %522 = vmatprep.subr.mxu0 0.0
        %523 = vmatpush1.msra.mxu0 0.0
        %524 = vmatprep.subr.mxu0 0.0
        %525 = vmatpush1.msra.mxu0 0.0
        %526 = vmatprep.subr.mxu0 0.0
        %527 = vmatpush1.msra.mxu0 0.0
        %528 = vmatprep.subr.mxu0 0.0
        %529 = vmatpush1.msra.mxu0 0.0
        %530 = vmatprep.subr.mxu0 0.0
        %531 = vmatpush1.msra.mxu0 0.0
        %532 = vmatprep.subr.mxu0 0.0
        %533 = vmatpush1.msra.mxu0 0.0
        %534 = vmatprep.subr.mxu0 0.0
        %535 = vmatpush1.msra.mxu0 0.0
        %536 = vmatprep.subr.mxu0 0.0
        %537 = vmatpush1.msra.mxu0 0.0
        %538 = vmatprep.subr.mxu0 0.0
        %539 = vmatpush1.msra.mxu0 0.0
        %540 = vmatprep.subr.mxu0 0.0
        %541 = vmatpush1.msra.mxu0 0.0
        %542 = vmatprep.mubr.f32.mxu0 0.0
        %543 = vmatmul.mubr.f32.gmra.mrb[0].mxu0 %v476
        %v544 = vpop.f32.mrb[0].mxu0
        %v545 = vadd.f32 0.0, %v544
        %v546 = vpop.f32.mrb[0].mxu0
        %v547 = vadd.f32 0.0, %v546
        %548 = vdwg.mxu0
        %v551 = vcombine.low %v545, %v547
        %553 = vst [vmem:[%s245] sm:$0xff] %v551
        %v555 = vsub.f32 %v545, %v277
        %v556 = vsub.f32 %v547, %v324
        %v557 = vadd.f32 %v469, %v470
        %558 = vadd.xlane.f32.xlu0 %v557
        %v559 = vpop.xlane.xlu0 %558
        %v560 = vadd.f32 %v471, %v472
        %561 = vadd.xlane.f32.xlu0 %v560
        %v562 = vpop.xlane.xlu0 %561
        %vm563 = vcmask 7168
        %564 = vst.msk [vmem:[%s276] sm:$0xff] %vm563, %v559
        %565 = vst.msk [vmem:[%s276 + $0x8] sm:$0xff] %vm563, %v562
        %v566 = vmul.f32 %v555, %v555
        %v567 = vmul.f32 %v556, %v556
        %v568 = vsel %vm332, %v566, 0.0
        %v569 = vsel %vm332, %v567, 0.0
        %v570 = vadd.f32 %v568, %v569
        %571 = vadd.xlane.f32.xlu0 %v570
        %v572 = vpop.xlane.xlu0 %571
        %v573 = vrot.slane %v572, 4
        %v574 = vadd.f32 %v572, %v573
        %v575 = vrot.slane %v574, 2
        %v576 = vadd.f32 %v574, %v575
        %v577 = vrot.slane %v576, 1
        %v578 = vadd.f32 %v576, %v577
        %s579 = vtos %v578
        %v580 = vstv %s579
        %vm581 = vcmask 0
        %582 = vst.msk [vmem:[%s276 + $0x10] sm:$0x1] %vm581, %v580
        %s583 = sand.u32 %s133, 1
        %s584 = scalar_lea.sflag [#allocation3], %s583
        %s585 = sand.u32 %s133, 1
        %s586 = smul.addr %s585, 8
        %s587 = scalar_lea.vmem [#allocation2], %s586
        %p588 = scmp.lt.s32.totalorder %s24, 1
        %s589 = scalar_select %p588, %s24, 1
        %p590 = scmp.lt.s32.totalorder %s25, 0
        %s591 = scalar_select %p590, %s25, 0
        %s592 = smul.addr %s591, 3
        %s593 = smul.addr %s589, 3
        %s594 = sadd.s32 %s592, %s593
        %s595 = smul.addr %s594, 8
        %s596 = scalar_lea.vmem %s5, %s595
        // Predicated region
        $region37: #{tpu_custom_call.1} parent=35 // pred_check
          %p597 = pneg %p143
        $region38: #{tpu_custom_call.1} parent=35 // pred_check_branch
          %599 = sbr.rel (%p597) target = $region40
        $region39: #{tpu_custom_call.1} parent=35 // pred_region
          %s600 = smul.u32 2, %s25
          %s602 = ssub.s32 128, 128
          %603 = vsyncadd %s584, %s602
          %s604 = smul.addr %s24, 2
          %s605 = sadd.s32 %s600, %s604
          %s606 = smul.addr %s605, 64
          %s607 = scalar_lea.hbm %s4, %s606
          %s609 = sshll.u32 %s587, 4
          %s610 = int_to_ptr.vmem [resolvable:$true] %s609
          %612 = dma.vmem_to_hbm [thread:$0]  %s610, 128, %s607, %s584
        $region40: #{tpu_custom_call.1} parent=35 // pred_fallthru
          _
        // Predicated region
        $region41: #{tpu_custom_call.1} parent=35 // pred_check
          %p613 = pneg %p171
        $region42: #{tpu_custom_call.1} parent=35 // pred_check_branch
          %615 = sbr.rel (%p613) target = $region44
        $region43: #{tpu_custom_call.1} parent=35 // pred_region
          _
        $region44: #{tpu_custom_call.1} parent=35 // pred_fallthru
          _
      $region36: #{tpu_custom_call.1} parent=5 // pred_fallthru
        _
      %p616 = scmp.le.s32.totalorder 2, %s15
      // Predicated region
      $region45: #{tpu_custom_call.1} parent=5 // pred_check
        %p617 = pneg %p616
      $region46: #{tpu_custom_call.1} parent=5 // pred_check_branch
        %619 = sbr.rel (%p617) target = $region48
      $region47: #{tpu_custom_call.1} parent=5 // pred_region
        %s620 = ssub.s32 %s15, 2
        // Predicated region
        $region49: #{tpu_custom_call.1} parent=47 // pred_check
          %p621 = pneg %p149
        $region50: #{tpu_custom_call.1} parent=47 // pred_check_branch
          %623 = sbr.rel (%p621) target = $region52
        $region51: #{tpu_custom_call.1} parent=47 // pred_region
          %s624 = sand.u32 %s134, 1
          %s625 = scalar_lea.sflag [#allocation3], %s624
          %s626 = sand.u32 %s134, 1
          %s627 = smul.addr %s626, 8
          %s628 = scalar_lea.vmem [#allocation2], %s627
          %629 = dma.done %s625, 128
        $region52: #{tpu_custom_call.1} parent=47 // pred_fallthru
          _
        // Predicated region
        $region53: #{tpu_custom_call.1} parent=47 // pred_check
          %p630 = pneg %p177
        $region54: #{tpu_custom_call.1} parent=47 // pred_check_branch
          %632 = sbr.rel (%p630) target = $region56
        $region55: #{tpu_custom_call.1} parent=47 // pred_region
          %p633 = scmp.lt.s32.totalorder %s26, 1
          %s634 = scalar_select %p633, %s26, 1
          %p635 = scmp.lt.s32.totalorder %s27, 0
          %s636 = scalar_select %p635, %s27, 0
          %s637 = smul.addr %s636, 3
          %s638 = smul.addr %s634, 3
          %s639 = sadd.s32 %s637, %s638
          %s640 = smul.addr %s639, 8
          %s641 = scalar_lea.vmem %s5, %s640
        $region56: #{tpu_custom_call.1} parent=47 // pred_fallthru
          _
      $region48: #{tpu_custom_call.1} parent=5 // pred_fallthru
        _
    $region6: #{tpu_custom_call.1} parent=1 // loop_footer
      %s19 = sadd.s32 1, %s15
    $region7: #{tpu_custom_call.1} parent=1 // loop_footer_branch
      %14 = sbr.rel target = $region3
    $region8: #{tpu_custom_call.1} parent=1 // loop_exit
      _
    %642 = vsyncpa [#allocation3], 1
    %s643 = scalar_lea.sflag [#allocation3], 1
    %644 = vsyncpa %s643, 1

</llo_original>
